<compile_context>
chip_gen: v5e
topology: v5e:2x2
jax: 0.10.0
libtpu: 0.0.40
codegen_flags: <defaults>
</compile_context>

<pallas_src>
import math

import jax
import jax.numpy as jnp
from jax.experimental import pallas as pl
from jax.experimental.pallas import tpu as pltpu


# ----------------------------- kernels ------------------------------------ #

def _glu_split_kernel(a_ref, g_ref, o_ref):
    # a_ref, g_ref, o_ref: (tile_r, tile_f) — pure element-wise on the VPU/EUP.
    o_ref[...] = (a_ref[...] * jax.nn.sigmoid(g_ref[...])).astype(o_ref.dtype)


def _glu_fused_kernel(x_ref, o_ref):
    # Fallback when the half-width F is not 128-lane aligned:
    # x_ref: (tile_r, 2*F), o_ref: (tile_r, F); split with static slices.
    f = o_ref.shape[-1]
    a = x_ref[:, :f]
    g = x_ref[:, f:]
    o_ref[...] = (a * jax.nn.sigmoid(g)).astype(o_ref.dtype)


# --------------------------- tiling helpers -------------------------------- #

_BLOCK_BUDGET_BYTES = 2 * 1024 * 1024       # ~2 MiB per block buffer
_VMEM_LIMIT_BYTES = 32 * 1024 * 1024        # safe on v5e/v6e/v7x


def _lane_block(f: int, cap_elems: int = 4096):
    """Largest multiple of 128 that EXACTLY divides f (so the gate half starts
    on a block boundary), capped at cap_elems. None if f is not 128-aligned."""
    if f % 128 != 0:
        return None
    best = 128
    cand = 128
    limit = min(f, cap_elems)
    while cand <= limit:
        if f % cand == 0:
            best = cand
        cand += 128
    return best


def _row_block(outer: int, row_bytes: int, budget: int) -> int:
    """Sublane-aligned row block.  Either the full axis (always legal) or a
    multiple of 8 sized to the VMEM budget; ragged last block is fine."""
    target = max(8, budget // max(row_bytes, 1))
    if outer <= target:
        return outer
    tile = target - (target % 8)
    return max(tile, 8)


# ------------------------------ wrapper ------------------------------------ #

def glu(x: jax.Array, dim: int) -> jax.Array:
    """Pallas TPU GLU matching torch.chunk(2, dim) semantics."""
    dim = dim % x.ndim
    two_c = x.shape[dim]
    if two_c % 2 != 0:
        raise ValueError("GLU split axis must have even size")
    c = two_c // 2
    outer = math.prod(x.shape[:dim])
    inner = math.prod(x.shape[dim + 1:])
    f = c * inner
    out_shape = x.shape[:dim] + (c,) + x.shape[dim + 1:]

    # Free reshape (no transpose): per row, columns [0, f) are the outputs
    # half and columns [f, 2f) are the gate half.
    x2d = x.reshape(outer, 2 * f)
    nbytes = jnp.dtype(x.dtype).itemsize

    tile_f = _lane_block(f)

    if tile_f is not None:
        # ---- lane-split path: two BlockSpecs pick the halves directly ----
        tile_r = _row_block(outer, tile_f * nbytes, _BLOCK_BUDGET_BYTES)

        # Never collapse to a single-block grid when splittable: give megacore
        # (v7x: 2 TCs) at least two blocks to shard.
        if pl.cdiv(outer, tile_r) * (f // tile_f) == 1:
            if tile_f % 256 == 0:
                tile_f //= 2
            elif outer >= 16:
                tile_r = max(8, (outer // 2) - ((outer // 2) % 8))

        grid_r = pl.cdiv(outer, tile_r)
        grid_f = f // tile_f
        nf = grid_f  # block offset of the gate half along the lane axis

        out2d = pl.pallas_call(
            _glu_split_kernel,
            out_shape=jax.ShapeDtypeStruct((outer, f), x.dtype),
            grid_spec=pltpu.PrefetchScalarGridSpec(
                num_scalar_prefetch=0,
                grid=(grid_r, grid_f),
                in_specs=[
                    # outputs half: columns [j*tile_f, ...)
                    pl.BlockSpec((tile_r, tile_f), lambda i, j: (i, j)),
                    # gate half: same rows, columns offset by f == nf blocks
                    pl.BlockSpec((tile_r, tile_f),
                                 lambda i, j, nf=nf: (i, j + nf)),
                ],
                out_specs=pl.BlockSpec((tile_r, tile_f), lambda i, j: (i, j)),
            ),
            compiler_params=pltpu.CompilerParams(
                dimension_semantics=("parallel", "parallel"),
                vmem_limit_bytes=_VMEM_LIMIT_BYTES,
            ),
        )(x2d, x2d)
    else:
        # ---- fallback: F not 128-aligned -> full-width block + in-kernel
        # static slice.  Row-tiled, still pipelined.
        tile_r = _row_block(outer, 2 * f * nbytes, _BLOCK_BUDGET_BYTES)
        if pl.cdiv(outer, tile_r) == 1 and outer >= 16:
            tile_r = max(8, (outer // 2) - ((outer // 2) % 8))
        grid_r = pl.cdiv(outer, tile_r)

        out2d = pl.pallas_call(
            _glu_fused_kernel,
            out_shape=jax.ShapeDtypeStruct((outer, f), x.dtype),
            grid_spec=pltpu.PrefetchScalarGridSpec(
                num_scalar_prefetch=0,
                grid=(grid_r,),
                in_specs=[pl.BlockSpec((tile_r, 2 * f), lambda i: (i, 0))],
                out_specs=pl.BlockSpec((tile_r, f), lambda i: (i, 0)),
            ),
            compiler_params=pltpu.CompilerParams(
                dimension_semantics=("parallel",),
                vmem_limit_bytes=_VMEM_LIMIT_BYTES,
            ),
        )(x2d)

    return out2d.reshape(out_shape)


def _glu_ref(x: jax.Array, dim: int) -> jax.Array:
    a, g = jnp.split(x, 2, axis=dim)
    return a * jax.nn.sigmoid(g)


if __name__ == "__main__":
    key = jax.random.PRNGKey(0)
    k1, k2 = jax.random.split(key)

    # Case 1: split along the last (feature) axis, shape (2, 8, 64).
    # F = 32 (not 128-aligned) -> fallback path, row-tiled grid of 2.
    x1 = jax.random.normal(k1, (2, 8, 64), dtype=jnp.float32)
    y1 = jax.block_until_ready(glu(x1, dim=-1))
    assert y1.shape == (2, 8, 32)
    assert jnp.allclose(y1, _glu_ref(x1, -1), atol=1e-6, rtol=1e-6)

    # Case 2: split along the channel axis of an NCHW tensor, (2, 8, 16, 16).
    # F = 4*256 = 1024 -> lane-split path, lane-dense blocks, 2-D grid.
    x2 = jax.random.normal(k2, (2, 8, 16, 16), dtype=jnp.float32)
    y2 = jax.block_until_ready(glu(x2, dim=1))
    assert y2.shape == (2, 4, 16, 16)
    assert jnp.allclose(y2, _glu_ref(x2, 1), atol=1e-6, rtol=1e-6)

    print("KERNEL_OK")
</pallas_src>

<mosaic_0001>
module attributes {stable_mosaic.version = 11 : i64} {
  func.func @_glu_fused_kernel(%arg0: i32, %arg1: memref<8x64xf32, #tpu.memory_space<vmem>>, %arg2: memref<8x32xf32, #tpu.memory_space<vmem>>) attributes {dimension_semantics = [#tpu.dimension_semantics<parallel>], iteration_bounds = array<i64: 2>, scalar_prefetch = 0 : i64, scratch_operands = 0 : i64, tpu.core_type = #tpu.core_type<tc>, window_params = [{transform_indices = @transform_0, window_bounds = array<i64: 8, 64>}, {transform_indices = @transform_1, window_bounds = array<i64: 8, 32>}]} {
    %c0 = arith.constant 0 : index
    %c0_0 = arith.constant 0 : index
    %0 = vector.load %arg1[%c0, %c0_0] : memref<8x64xf32, #tpu.memory_space<vmem>>, vector<8x32xf32>
    %c0_1 = arith.constant 0 : index
    %c32 = arith.constant 32 : index
    %1 = vector.load %arg1[%c0_1, %c32] : memref<8x64xf32, #tpu.memory_space<vmem>>, vector<8x32xf32>
    %2 = arith.negf %1 : vector<8x32xf32>
    %3 = math.exp %2 : vector<8x32xf32>
    %cst = arith.constant 1.000000e+00 : f32
    %4 = vector.broadcast %cst : f32 to vector<8x32xf32>
    %5 = arith.addf %4, %3 : vector<8x32xf32>
    %6 = arith.divf %4, %5 : vector<8x32xf32>
    %7 = arith.mulf %0, %6 : vector<8x32xf32>
    %c0_2 = arith.constant 0 : index
    %c0_3 = arith.constant 0 : index
    %8 = vector.load %arg2[%c0_2, %c0_3] : memref<8x32xf32, #tpu.memory_space<vmem>>, vector<8x32xf32>
    tpu.vector_store %arg2[%c0_2, %c0_3], %7 {strides = array<i32>} : memref<8x32xf32, #tpu.memory_space<vmem>>, vector<8x32xf32>,
    return
  }
  func.func @transform_0(%arg0: i32) -> (i32, i32) {
    %c0_i32 = arith.constant 0 : i32
    %c0_i32_0 = arith.constant 0 : i32
    return %arg0, %c0_i32 : i32, i32
  }
  func.func @transform_1(%arg0: i32) -> (i32, i32) {
    %c0_i32 = arith.constant 0 : i32
    %c0_i32_0 = arith.constant 0 : i32
    return %arg0, %c0_i32 : i32, i32
  }
}

</mosaic_0001>

<llo_original>
// kernel: tpu_custom_call.1
$region0: #{tpu_custom_call.1}
  #allocation0 [shape = 'u32[]', space=smem, size = 0x4, offset = 0x4, fixed_abs, tag = 'smem constant byte address 0x4 - core index']
  #allocation1 [shape = 'u32[72,128]{1,0:T(1,128)}', space=vmem, size = 0x9000, scoped, tag = 'internal scratch']
  %s0 = inlined_call_operand.hbm [shape: f32[16,64], index: 0, kind: input, shape index: {}]
  %s1 = inlined_call_operand.hbm [shape: f32[16,32], index: 1, kind: output, shape index: {}]
  %s2 = sld [smem:[#allocation0]]
  $region41: #{tpu_custom_call.1} parent=0
    _
  %s4 = ssub.s32 1, %s2
  %s5 = scalar_select 0, %s4, %s2
  $region1: #{tpu_custom_call.1} parent=0
    #allocation2 [shape = 'u8[8192]{0}', space=vmem, size = 0x2000, scoped, tag = 'input window, operand 0']
    #allocation3 [shape = 's32[2]{0}', space=sflag, size = 0x8, scoped, tag = 'scoped memory for tpu_custom_call.1']
    #allocation4 [shape = 's32[2]{0}', space=sflag, size = 0x8, scoped, tag = 'scoped memory for tpu_custom_call.1']
    #allocation5 [shape = 'u8[8192]{0}', space=vmem, size = 0x2000, scoped, tag = 'output window, operand 0']
    %6 = vsyncpa [#allocation3], 0
    %s7 = scalar_lea.sflag [#allocation3], 1
    %8 = vsyncpa %s7, 0
    %9 = vsyncpa [#allocation4], 0
    %s10 = scalar_lea.sflag [#allocation4], 1
    %11 = vsyncpa %s10, 0
    loop: start=0, step=1, limit=4
    $region2: #{tpu_custom_call.1} parent=1 // loop_pre_header
      _
    $region3: #{tpu_custom_call.1} parent=1 // loop_header
      %s13 = sphi 0, %s17
      %p14 = scmp.ge.s32.totalorder %s13, 4
      %s23 = sphi 0, %s25
      %s26 = sphi 0, %s23
      %s27 = sphi 0, %s26
      %s43 = sphi 0, %s27
      %s49 = sphi 0, %s51
      %s52 = sphi 0, %s49
      %s53 = sphi 0, %s52
      %s69 = sphi 0, %s53
    $region4: #{tpu_custom_call.1} parent=1 // loop_header_branch
      %16 = sbr.rel (%p14) target = $region8
    $region5: #{tpu_custom_call.1} parent=1 // loop_body
      %s18 = ssub.s32 %s13, 1
      %s19 = ssub.s32 %s13, 2
      %s20 = sadd.s32 %s13, 1
      %s21 = ssub.s32 %s13, %s20
      %p22 = scmp.eq.s32.totalorder %s21, 0
      %s24 = sadd.s32 %s23, 1
      %s25 = scalar_select %p22, %s23, %s24
      %p28 = pneg %p22
      %p29 = scmp.eq.s32.totalorder %s13, 1
      %p30 = por %p28, %p29
      %p31 = scmp.ne.s32.totalorder %s23, %s26
      %p32 = scmp.eq.s32.totalorder %s13, 0
      %p33 = por %p31, %p32
      %p34 = scmp.ne.s32.totalorder %s23, %s26
      %p35 = scmp.eq.s32.totalorder %s18, 1
      %p36 = por %p34, %p35
      %p37 = scmp.ne.s32.totalorder %s26, %s27
      %p38 = scmp.eq.s32.totalorder %s18, 0
      %p39 = por %p37, %p38
      %p40 = scmp.ne.s32.totalorder %s26, %s27
      %p41 = scmp.eq.s32.totalorder %s19, 1
      %p42 = por %p40, %p41
      %p44 = scmp.ne.s32.totalorder %s27, %s43
      %p45 = scmp.eq.s32.totalorder %s19, 0
      %p46 = por %p44, %p45
      %s47 = ssub.s32 %s13, %s20
      %p48 = scmp.eq.s32.totalorder %s47, 0
      %s50 = sadd.s32 %s49, 1
      %s51 = scalar_select %p48, %s49, %s50
      %p54 = pneg %p48
      %p55 = scmp.eq.s32.totalorder %s13, 1
      %p56 = por %p54, %p55
      %p57 = scmp.ne.s32.totalorder %s49, %s52
      %p58 = scmp.eq.s32.totalorder %s13, 0
      %p59 = por %p57, %p58
      %p60 = scmp.ne.s32.totalorder %s49, %s52
      %p61 = scmp.eq.s32.totalorder %s18, 1
      %p62 = por %p60, %p61
      %p63 = scmp.ne.s32.totalorder %s52, %s53
      %p64 = scmp.eq.s32.totalorder %s18, 0
      %p65 = por %p63, %p64
      %p66 = scmp.ne.s32.totalorder %s52, %s53
      %p67 = scmp.eq.s32.totalorder %s19, 1
      %p68 = por %p66, %p67
      %p70 = scmp.ne.s32.totalorder %s53, %s69
      %p71 = scmp.eq.s32.totalorder %s19, 0
      %p72 = por %p70, %p71
      %p73 = scmp.le.s32.totalorder 1, %s13
      %p74 = scmp.lt.s32.totalorder %s13, 3
      %p75 = pnand %p73, %p74
      %p76 = pneg %p75
      // Predicated region
      $region9: #{tpu_custom_call.1} parent=5 // pred_check
        _
      $region10: #{tpu_custom_call.1} parent=5 // pred_check_branch
        %78 = sbr.rel (%p75) target = $region12
      $region11: #{tpu_custom_call.1} parent=5 // pred_region
        %s79 = ssub.s32 %s13, 1
      $region12: #{tpu_custom_call.1} parent=5 // pred_fallthru
        _
      %p80 = scmp.lt.s32.totalorder %s13, 2
      // Predicated region
      $region13: #{tpu_custom_call.1} parent=5 // pred_check
        %p81 = pneg %p80
      $region14: #{tpu_custom_call.1} parent=5 // pred_check_branch
        %83 = sbr.rel (%p81) target = $region16
      $region15: #{tpu_custom_call.1} parent=5 // pred_region
        // Predicated region
        $region17: #{tpu_custom_call.1} parent=15 // pred_check
          %p84 = pneg %p33
        $region18: #{tpu_custom_call.1} parent=15 // pred_check_branch
          %86 = sbr.rel (%p84) target = $region20
        $region19: #{tpu_custom_call.1} parent=15 // pred_region
          %s87 = sand.u32 %s23, 1
          %s88 = scalar_lea.sflag [#allocation3], %s87
          %s89 = sand.u32 %s23, 1
          %s90 = smul.addr %s89, 8
          %s91 = scalar_lea.vmem [#allocation2], %s90
          %93 = vsyncadd %s88, 0
          %s94 = smul.addr %s13, 8
          %s95 = scalar_lea.hbm %s0, %s94
          %s97 = sshll.u32 %s95, 4
          %s98 = int_to_ptr.hbm [resolvable:$true] %s97
          %s99 = sshll.u32 %s91, 4
          %s100 = int_to_ptr.vmem [resolvable:$true] %s99
          %102 = dma.hbm_to_vmem [thread:$0]  %s98, 128, %s100, %s88
        $region20: #{tpu_custom_call.1} parent=15 // pred_fallthru
          _
      $region16: #{tpu_custom_call.1} parent=5 // pred_fallthru
        _
      %p103 = scmp.le.s32.totalorder 1, %s13
      %p104 = scmp.lt.s32.totalorder %s13, 3
      %p105 = pnand %p103, %p104
      %p106 = pneg %p105
      // Predicated region
      $region21: #{tpu_custom_call.1} parent=5 // pred_check
        _
      $region22: #{tpu_custom_call.1} parent=5 // pred_check_branch
        %108 = sbr.rel (%p105) target = $region24
      $region23: #{tpu_custom_call.1} parent=5 // pred_region
        %s109 = ssub.s32 %s13, 1
        %s110 = sand.u32 %s26, 1
        %s111 = scalar_lea.sflag [#allocation3], %s110
        %s112 = sand.u32 %s26, 1
        %s113 = smul.addr %s112, 8
        %s114 = scalar_lea.vmem [#allocation2], %s113
        // Predicated region
        $region25: #{tpu_custom_call.1} parent=23 // pred_check
          %p115 = pneg %p39
        $region26: #{tpu_custom_call.1} parent=23 // pred_check_branch
          %117 = sbr.rel (%p115) target = $region28
        $region27: #{tpu_custom_call.1} parent=23 // pred_region
          %119 = dma.done %s111, 128
        $region28: #{tpu_custom_call.1} parent=23 // pred_fallthru
          _
        %s120 = sand.u32 %s26, 1
        %s121 = scalar_lea.sflag [#allocation3], %s120
        %s122 = sand.u32 %s26, 1
        %s123 = smul.addr %s122, 8
        %s124 = scalar_lea.vmem [#allocation2], %s123
        %p125 = pneg %p39
        %p126 = pneg %p36
        %p127 = pneg %p65
        %p128 = pneg %p62
        %s129 = sand.u32 %s52, 1
        %s130 = scalar_lea.sflag [#allocation4], %s129
        %s131 = sand.u32 %s52, 1
        %s132 = smul.addr %s131, 8
        %s133 = scalar_lea.vmem [#allocation5], %s132
        %v134 = vld [vmem:[%s114] sm:$0xff]
        %v135 = vxor.u32 %v134, 2147483648
        %v136 = vmul.f32 %v135, 1.442695
        %v137 = vpow.pop %v136
        %v138 = vadd.f32 %v137, 1.0
        %v139 = vrcp.pop %v138
        %v140 = vmul.f32 %v138, %v139
        %v141 = vsub.f32 1.0, %v140
        %v142 = vmul.f32 %v139, %v141
        %v143 = vadd.f32 %v139, %v142
        %vm144 = vweird.f32 %v138
        %vm145 = vweird.f32 %v139
        %vm146 = vmor %vm144, %vm145
        %v147 = vsel %vm146, %v139, %v143
        %v148 = vand.u32 2147483647, %v138
        %vm149 = vcmp.eq.f32.partialorder %v148, 8.507059e+37
        %v150 = vand.u32 %v138, 2147483648
        %v151 = vor.u32 1.1754944e-38, %v150
        %v152 = vsel %vm149, %v151, %v147
        %v153 = vmul.f32 1.0, %v152
        %155 = vrot.lane.b32.xlu0 %v153, 96
        %v156 = vpop.permute.xlu0 %155
        %v158 = vmul.f32 %v134, %v156
        %vm159 = vcmask 261120
        %160 = vst.msk [vmem:[%s133] sm:$0xff] %vm159, %v158
        %s161 = sand.u32 %s52, 1
        %s162 = scalar_lea.sflag [#allocation4], %s161
        %s163 = sand.u32 %s52, 1
        %s164 = smul.addr %s163, 8
        %s165 = scalar_lea.vmem [#allocation5], %s164
        // Predicated region
        $region29: #{tpu_custom_call.1} parent=23 // pred_check
          %p166 = pneg %p62
        $region30: #{tpu_custom_call.1} parent=23 // pred_check_branch
          %168 = sbr.rel (%p166) target = $region32
        $region31: #{tpu_custom_call.1} parent=23 // pred_region
          %170 = vsyncadd %s162, 0
          %s171 = smul.addr %s18, 8
          %s172 = scalar_lea.hbm %s1, %s171
          %s174 = sshll.u32 %s165, 4
          %s175 = int_to_ptr.vmem [resolvable:$true] %s174
          %s176 = sshll.u32 %s172, 4
          %s177 = int_to_ptr.hbm [resolvable:$true] %s176
          %179 = dma.vmem_to_hbm [thread:$0]  %s175, 128, %s177, %s162
        $region32: #{tpu_custom_call.1} parent=23 // pred_fallthru
          _
      $region24: #{tpu_custom_call.1} parent=5 // pred_fallthru
        _
      %p180 = scmp.le.s32.totalorder 2, %s13
      // Predicated region
      $region33: #{tpu_custom_call.1} parent=5 // pred_check
        %p181 = pneg %p180
      $region34: #{tpu_custom_call.1} parent=5 // pred_check_branch
        %183 = sbr.rel (%p181) target = $region36
      $region35: #{tpu_custom_call.1} parent=5 // pred_region
        %s184 = ssub.s32 %s13, 2
        // Predicated region
        $region37: #{tpu_custom_call.1} parent=35 // pred_check
          %p185 = pneg %p68
        $region38: #{tpu_custom_call.1} parent=35 // pred_check_branch
          %187 = sbr.rel (%p185) target = $region40
        $region39: #{tpu_custom_call.1} parent=35 // pred_region
          %s188 = sand.u32 %s53, 1
          %s189 = scalar_lea.sflag [#allocation4], %s188
          %s190 = sand.u32 %s53, 1
          %s191 = smul.addr %s190, 8
          %s192 = scalar_lea.vmem [#allocation5], %s191
          %194 = dma.done %s189, 128
        $region40: #{tpu_custom_call.1} parent=35 // pred_fallthru
          _
      $region36: #{tpu_custom_call.1} parent=5 // pred_fallthru
        _
    $region6: #{tpu_custom_call.1} parent=1 // loop_footer
      %s17 = sadd.s32 1, %s13
    $region7: #{tpu_custom_call.1} parent=1 // loop_footer_branch
      %12 = sbr.rel target = $region3
    $region8: #{tpu_custom_call.1} parent=1 // loop_exit
      _
    %195 = vsyncpa [#allocation3], 1
    %s196 = scalar_lea.sflag [#allocation3], 1
    %197 = vsyncpa %s196, 1
    %198 = vsyncpa [#allocation4], 1
    %s199 = scalar_lea.sflag [#allocation4], 1
    %200 = vsyncpa %s199, 1

</llo_original>
